<compile_context>
chip_gen: v7x
topology: tpu7x:2x2x1
jax: 0.10.0
libtpu: 0.0.40
codegen_flags: <defaults>
</compile_context>

<pallas_src>
import functools

import jax
import jax.numpy as jnp
from jax.experimental import pallas as pl
from jax.experimental.pallas import tpu as pltpu


def _round_up(x: int, m: int) -> int:
    return ((x + m - 1) // m) * m


def _vmem_capacity_bytes() -> int:
    """Physical VMEM per TensorCore; conservative fallback if undetectable."""
    try:
        info = pltpu.get_tpu_info()
        cap = getattr(info, "vmem_capacity_bytes", None)
        if cap:
            return int(cap)
    except Exception:
        pass
    return 64 << 20  # v7x has the smallest VMEM (64 MiB/TC) -> safe everywhere.


def _tile_vmem_bytes(tm: int, tn: int, tk: int, in_item: int, out_item: int) -> int:
    # Double-buffered lhs/rhs/out tiles + single-buffered f32 accumulator.
    return 2 * (tm * tk + tk * tn) * in_item + 2 * tm * tn * out_item + tm * tn * 4


def _select_tiles(M, N, K, in_item, out_item, budget, tm=None, tn=None, tk=None):
    """Pick (TM, TN, TK).  TM is the primary knob; K is tiled only so TM can grow."""
    tn_full = _round_up(N, 128)
    TN = min(_round_up(tn, 128), tn_full) if tn else min(512, tn_full)

    tm_cap = _round_up(M, 8)
    if tm:
        tm_cands = [min(_round_up(tm, 8), tm_cap)]
    else:
        tm_cands = [t for t in (1024, 768, 512, 384, 256, 128) if t <= tm_cap] or [tm_cap]

    if tk:
        tk_cands = [K if tk >= K else _round_up(tk, 128)]
    else:
        # Prefer untiled K (single MXU pass per output tile, no grid reduction),
        # then progressively smaller K tiles (multiples of 128).
        tk_cands = [K] + [t for t in (4096, 2048, 1024, 512, 256, 128) if t < K]

    for TM in tm_cands:            # largest TM first (biggest lever)
        for TK in tk_cands:        # untiled K first, then tile K to make TM fit
            if _tile_vmem_bytes(TM, TN, TK, in_item, out_item) <= budget:
                return TM, TN, TK
    return tm_cands[-1], TN, tk_cands[-1]


def _tensordot_kernel(q_ref, t_ref, o_ref, acc_ref, *, metric: str, k_dim: int):
    # q_ref: (TM, TK)   t_ref: (TK, TN)   o_ref: (TM, TN)   acc_ref: (TM, TN) f32
    k = pl.program_id(2)

    @pl.when(k == 0)
    def _():
        acc_ref[...] = jnp.zeros_like(acc_ref)

    acc_ref[...] += jnp.dot(q_ref[...], t_ref[...],
                            preferred_element_type=jnp.float32)

    @pl.when(k == pl.num_programs(2) - 1)
    def _():
        s = acc_ref[...]
        if metric == "euclidean":
            s = 1.0 - 2.0 * s
        elif metric == "hamming":
            s = s * (1.0 / float(k_dim))
        o_ref[...] = s.astype(o_ref.dtype)


def tensor_dot(
    query: jax.Array,
    target: jax.Array,
    metric: str = "cosine",
    *,
    use_bf16_matmul: bool = True,
    out_dtype=jnp.float32,
    tm=None,
    tn=None,
    tk=None,
) -> jax.Array:
    """Pallas equivalent of TensorDot(pattern='iak,jbk->iabj', metric=metric)."""
    if metric not in ("cosine", "euclidean", "hamming"):
        raise ValueError(f"unknown metric: {metric}")

    I, A, K = query.shape
    J, B, Kt = target.shape
    assert K == Kt, "contraction dims must match"
    M, N = I * A, B * J

    # bf16 fast path: cast BEFORE the wrapper transpose so that HBM pass is halved.
    if use_bf16_matmul:
        query = query.astype(jnp.bfloat16)
        target = target.astype(jnp.bfloat16)

    # Flatten to a plain (M, K) @ (K, N) matmul.  Column index n = b*J + j so the
    # final (M, N) -> (I, A, B, J) reshape is layout-free.
    lhs = query.reshape(M, K)
    rhs = jnp.transpose(target, (2, 1, 0)).reshape(K, N)  # rhs[k, b*J + j] = target[j, b, k]

    in_item = lhs.dtype.itemsize
    out_item = jnp.dtype(out_dtype).itemsize

    cap = _vmem_capacity_bytes()
    budget = min(int(cap * 0.6), 96 << 20)
    TM, TN, TK = _select_tiles(M, N, K, in_item, out_item, budget, tm=tm, tn=tn, tk=tk)

    Mp = _round_up(M, TM)
    Np = _round_up(N, TN)
    Kp = _round_up(K, TK)
    if Mp != M or Kp != K:
        lhs = jnp.pad(lhs, ((0, Mp - M), (0, Kp - K)))
    if Kp != K or Np != N:
        rhs = jnp.pad(rhs, ((0, Kp - K), (0, Np - N)))

    m_i, n_j, n_k = Mp // TM, Np // TN, Kp // TK

    # Grid orientation: with the non-swapped grid (i outer, j inner) lhs is
    # resident and rhs is re-streamed; swapped is the opposite.  Pick the one
    # with less total HBM traffic.  (With n_k > 1 both are re-streamed anyway.)
    lhs_elems_ns = Mp * Kp if n_k == 1 else n_j * Mp * Kp
    rhs_elems_ns = m_i * Np * Kp
    lhs_elems_sw = n_j * Mp * Kp
    rhs_elems_sw = Np * Kp if n_k == 1 else m_i * Np * Kp
    swap = (lhs_elems_sw + rhs_elems_sw) < (lhs_elems_ns + rhs_elems_ns)

    if swap:
        grid = (n_j, m_i, n_k)
        lhs_spec = pl.BlockSpec((TM, TK), lambda j, i, k: (i, k))
        rhs_spec = pl.BlockSpec((TK, TN), lambda j, i, k: (k, j))
        out_spec = pl.BlockSpec((TM, TN), lambda j, i, k: (i, j))
        lhs_elems, rhs_elems = lhs_elems_sw, rhs_elems_sw
    else:
        grid = (m_i, n_j, n_k)
        lhs_spec = pl.BlockSpec((TM, TK), lambda i, j, k: (i, k))
        rhs_spec = pl.BlockSpec((TK, TN), lambda i, j, k: (k, j))
        out_spec = pl.BlockSpec((TM, TN), lambda i, j, k: (i, j))
        lhs_elems, rhs_elems = lhs_elems_ns, rhs_elems_ns

    kernel = functools.partial(_tensordot_kernel, metric=metric, k_dim=K)

    # Explicit scoped-VMEM limit so the chosen tiles actually fit the pipeline
    # (default scoped limits: 16 MiB v5e, 32 MiB v6e/v7x).
    vmem_est = _tile_vmem_bytes(TM, TN, TK, in_item, out_item)
    vmem_limit = max(32 << 20, min(int(vmem_est * 1.25) + (4 << 20), 100 << 20))

    cost = pl.CostEstimate(
        flops=2 * M * N * K,
        transcendentals=0,
        bytes_accessed=int((lhs_elems + rhs_elems) * in_item + Mp * Np * out_item),
    )

    out = pl.pallas_call(
        kernel,
        out_shape=jax.ShapeDtypeStruct((Mp, Np), out_dtype),
        grid=grid,
        in_specs=[lhs_spec, rhs_spec],
        out_specs=out_spec,
        scratch_shapes=[pltpu.VMEM((TM, TN), jnp.float32)],
        compiler_params=pltpu.CompilerParams(
            dimension_semantics=("parallel", "parallel", "arbitrary"),
            vmem_limit_bytes=int(vmem_limit),
        ),
        cost_estimate=cost,
    )(lhs, rhs)

    return out[:M, :N].reshape(I, A, B, J)


if __name__ == "__main__":
    key = jax.random.PRNGKey(0)
    kq, kt = jax.random.split(key)

    # ---- Test 1: ViSiL-pattern small shapes, all metrics ----
    I, A, K = 2, 8, 32
    J, B = 4, 8
    query = jax.random.normal(kq, (I, A, K), dtype=jnp.float32)
    target = jax.random.normal(kt, (J, B, K), dtype=jnp.float32)

    ref = jnp.einsum("iak,jbk->iabj", query, target)
    ref_bf = jnp.einsum(
        "iak,jbk->iabj",
        query.astype(jnp.bfloat16),
        target.astype(jnp.bfloat16),
        preferred_element_type=jnp.float32,
    )

    # Default path (bf16 MXU, f32 accumulation), 'cosine'.
    sim = jax.block_until_ready(tensor_dot(query, target, metric="cosine"))
    assert sim.shape == (I, A, B, J)
    assert jnp.allclose(sim, ref_bf, atol=1e-2, rtol=1e-2), "bf16 cosine mismatch"

    # Exact f32 path, all three metrics.
    sim_c = jax.block_until_ready(
        tensor_dot(query, target, metric="cosine", use_bf16_matmul=False))
    assert jnp.allclose(sim_c, ref, atol=1e-5, rtol=1e-5), "f32 cosine mismatch"
    sim_e = jax.block_until_ready(
        tensor_dot(query, target, metric="euclidean", use_bf16_matmul=False))
    assert jnp.allclose(sim_e, 1.0 - 2.0 * ref, atol=1e-5, rtol=1e-5), "euclidean mismatch"
    sim_h = jax.block_until_ready(
        tensor_dot(query, target, metric="hamming", use_bf16_matmul=False))
    assert jnp.allclose(sim_h, ref / K, atol=1e-5, rtol=1e-5), "hamming mismatch"

    # ---- Test 2: M >> N exercises the swapped grid orientation + M/N padding ----
    kq2, kt2 = jax.random.split(jax.random.PRNGKey(1))
    q2 = jax.random.normal(kq2, (8, 40, 64), dtype=jnp.float32)   # M = 320
    t2 = jax.random.normal(kt2, (16, 8, 64), dtype=jnp.float32)   # N = 128
    ref2 = jnp.einsum("iak,jbk->iabj", q2, t2)
    sim2 = jax.block_until_ready(tensor_dot(q2, t2, use_bf16_matmul=False))
    assert sim2.shape == ref2.shape
    assert jnp.allclose(sim2, ref2, atol=1e-2, rtol=1e-2), "swapped-grid mismatch"

    # ---- Test 3: forced K tiling exercises the grid-reduction accumulator ----
    kq3, kt3 = jax.random.split(jax.random.PRNGKey(2))
    q3 = jax.random.normal(kq3, (2, 16, 256), dtype=jnp.float32)  # M = 32, K = 256
    t3 = jax.random.normal(kt3, (4, 8, 256), dtype=jnp.float32)   # N = 32
    ref3 = jnp.einsum("iak,jbk->iabj", q3, t3)
    sim3 = jax.block_until_ready(tensor_dot(q3, t3, use_bf16_matmul=False, tk=128))
    assert jnp.allclose(sim3, ref3, atol=1e-2, rtol=1e-2), "K-tiled accumulator mismatch"

    print("KERNEL_OK")
</pallas_src>

<mosaic_0001>
module attributes {stable_mosaic.version = 11 : i64} {
  func.func @_tensordot_kernel(%arg0: i32, %arg1: i32, %arg2: i32, %arg3: memref<16x32xbf16, #tpu.memory_space<vmem>>, %arg4: memref<32x128xbf16, #tpu.memory_space<vmem>>, %arg5: memref<16x128xf32, #tpu.memory_space<vmem>>, %arg6: memref<16x128xf32, #tpu.memory_space<vmem>>) attributes {dimension_semantics = [#tpu.dimension_semantics<parallel>, #tpu.dimension_semantics<parallel>, #tpu.dimension_semantics<arbitrary>], iteration_bounds = array<i64: 1, 1, 1>, scalar_prefetch = 0 : i64, scratch_operands = 1 : i64, tpu.core_type = #tpu.core_type<tc>, window_params = [{transform_indices = @transform_0, window_bounds = array<i64: 16, 32>}, {transform_indices = @transform_1, window_bounds = array<i64: 32, 128>}, {transform_indices = @transform_2, window_bounds = array<i64: 16, 128>}]} {
    %c0_i32 = arith.constant 0 : i32
    %0 = arith.cmpi eq, %arg2, %c0_i32 : i32
    %1 = arith.extui %0 : i1 to i32
    %c0_i32_0 = arith.constant 0 : i32
    %2 = arith.cmpi ne, %1, %c0_i32_0 : i32
    scf.if %2 {
      %cst_10 = arith.constant 0.000000e+00 : f32
      %12 = vector.broadcast %cst_10 : f32 to vector<16x128xf32>
      %c0_11 = arith.constant 0 : index
      %c0_12 = arith.constant 0 : index
      %13 = vector.load %arg6[%c0_11, %c0_12] : memref<16x128xf32, #tpu.memory_space<vmem>>, vector<16x128xf32>
      tpu.vector_store %arg6[%c0_11, %c0_12], %12 {strides = array<i32>} : memref<16x128xf32, #tpu.memory_space<vmem>>, vector<16x128xf32>,
    } else {
    }
    %c0 = arith.constant 0 : index
    %c0_1 = arith.constant 0 : index
    %3 = vector.load %arg6[%c0, %c0_1] : memref<16x128xf32, #tpu.memory_space<vmem>>, vector<16x128xf32>
    %c0_2 = arith.constant 0 : index
    %c0_3 = arith.constant 0 : index
    %4 = vector.load %arg3[%c0_2, %c0_3] : memref<16x32xbf16, #tpu.memory_space<vmem>>, vector<16x32xbf16>
    %c0_4 = arith.constant 0 : index
    %c0_5 = arith.constant 0 : index
    %5 = vector.load %arg4[%c0_4, %c0_5] : memref<32x128xbf16, #tpu.memory_space<vmem>>, vector<32x128xbf16>
    %cst = arith.constant dense<0.000000e+00> : vector<16x128xf32>
    %6 = tpu.matmul %4, %5, %cst {dimension_numbers = #tpu.dot_dimension_numbers<[1], [0], [0], [1], [0, 0, 1, 1], [], []>} : vector<16x32xbf16>, vector<32x128xbf16>, vector<16x128xf32> -> vector<16x128xf32>
    %7 = arith.addf %3, %6 : vector<16x128xf32>
    %c0_6 = arith.constant 0 : index
    %c0_7 = arith.constant 0 : index
    %8 = vector.load %arg6[%c0_6, %c0_7] : memref<16x128xf32, #tpu.memory_space<vmem>>, vector<16x128xf32>
    tpu.vector_store %arg6[%c0_6, %c0_7], %7 {strides = array<i32>} : memref<16x128xf32, #tpu.memory_space<vmem>>, vector<16x128xf32>,
    %c0_i32_8 = arith.constant 0 : i32
    %9 = arith.cmpi eq, %arg2, %c0_i32_8 : i32
    %10 = arith.extui %9 : i1 to i32
    %c0_i32_9 = arith.constant 0 : i32
    %11 = arith.cmpi ne, %10, %c0_i32_9 : i32
    scf.if %11 {
      %c0_10 = arith.constant 0 : index
      %c0_11 = arith.constant 0 : index
      %12 = vector.load %arg6[%c0_10, %c0_11] : memref<16x128xf32, #tpu.memory_space<vmem>>, vector<16x128xf32>
      %c0_12 = arith.constant 0 : index
      %c0_13 = arith.constant 0 : index
      %13 = vector.load %arg5[%c0_12, %c0_13] : memref<16x128xf32, #tpu.memory_space<vmem>>, vector<16x128xf32>
      tpu.vector_store %arg5[%c0_12, %c0_13], %12 {strides = array<i32>} : memref<16x128xf32, #tpu.memory_space<vmem>>, vector<16x128xf32>,
    } else {
    }
    return
  }
  func.func @transform_0(%arg0: i32, %arg1: i32, %arg2: i32) -> (i32, i32) {
    %c0_i32 = arith.constant 0 : i32
    return %arg0, %arg2 : i32, i32
  }
  func.func @transform_1(%arg0: i32, %arg1: i32, %arg2: i32) -> (i32, i32) {
    %c0_i32 = arith.constant 0 : i32
    return %arg2, %arg1 : i32, i32
  }
  func.func @transform_2(%arg0: i32, %arg1: i32, %arg2: i32) -> (i32, i32) {
    %c0_i32 = arith.constant 0 : i32
    return %arg0, %arg1 : i32, i32
  }
}

</mosaic_0001>

<llo_original>
// kernel: tpu_custom_call.1
$region0: #{tpu_custom_call.1}
  #allocation0 [shape = 'u32[]', space=smem, size = 0x4, offset = 0x4, fixed_abs, tag = 'smem constant byte address 0x4 - core index']
  #allocation1 [shape = 'u32[144,128]{1,0:T(1,128)}', space=vmem, size = 0x12000, scoped, tag = 'internal scratch']
  #allocation2 [shape = 'f32[16,128]{1,0:T(8,128)}', space=vmem, size = 0x2000, scoped, tag = 'scratch operand']
  %s0 = inlined_call_operand.hbm [shape: bf16[16,32], index: 0, kind: input, shape index: {}]
  %s1 = inlined_call_operand.hbm [shape: bf16[32,128], index: 1, kind: input, shape index: {}]
  %s2 = inlined_call_operand.hbm [shape: f32[16,128], index: 2, kind: output, shape index: {}]
  %s3 = sld [smem:[#allocation0]]
  $region34: #{tpu_custom_call.1} parent=0
    _
  %s5 = ssub.s32 1, %s3
  %s6 = scalar_select 0, %s5, %s3
  $region1: #{tpu_custom_call.1} parent=0
    #allocation3 [shape = 'u8[4096]{0}', space=vmem, size = 0x1000, scoped, tag = 'input window, operand 0, single buffered']
    #allocation4 [shape = 's32[1]{0}', space=sflag, size = 0x4, scoped, tag = 'scoped memory for tpu_custom_call.1']
    #allocation5 [shape = 's32[1]{0}', space=sflag, size = 0x4, scoped, tag = 'scoped memory for tpu_custom_call.1']
    #allocation6 [shape = 'u8[8192]{0}', space=vmem, size = 0x2000, scoped, tag = 'input window, operand 1, single buffered']
    #allocation7 [shape = 's32[1]{0}', space=sflag, size = 0x4, scoped, tag = 'scoped memory for tpu_custom_call.1']
    #allocation8 [shape = 'u8[8192]{0}', space=vmem, size = 0x2000, scoped, tag = 'output window, operand 0, single buffered']
    %7 = vsyncpa [#allocation4], 0
    %8 = vsyncpa [#allocation7], 0
    %9 = vsyncpa [#allocation5], 0
    // Predicated region
    $region2: #{tpu_custom_call.1} parent=1 // pred_check
      _
    $region3: #{tpu_custom_call.1} parent=1 // pred_check_branch
      %11 = sbr.rel (0) target = $region5
    $region4: #{tpu_custom_call.1} parent=1 // pred_region
      %s13 = ssub.s32 128, 128
      %14 = vsyncadd [#allocation4], %s13
      %s15 = sshll.u32 [#allocation3], 4
      %s16 = int_to_ptr.vmem [resolvable:$true] %s15
      %21 = dma.hbm_to_vmem [thread:$0]  %s0, 128, %s16, [#allocation4], 64, 64, 4
    $region5: #{tpu_custom_call.1} parent=1 // pred_fallthru
      _
    // Predicated region
    $region6: #{tpu_custom_call.1} parent=1 // pred_check
      _
    $region7: #{tpu_custom_call.1} parent=1 // pred_check_branch
      %23 = sbr.rel (0) target = $region9
    $region8: #{tpu_custom_call.1} parent=1 // pred_region
      %s25 = ssub.s32 256, 256
      %26 = vsyncadd [#allocation7], %s25
      %s27 = sshll.u32 [#allocation6], 4
      %s28 = int_to_ptr.vmem [resolvable:$true] %s27
      %33 = dma.hbm_to_vmem [thread:$0]  %s1, 256, %s28, [#allocation7], 64, 64, 4
    $region9: #{tpu_custom_call.1} parent=1 // pred_fallthru
      _
    // Predicated region
    $region10: #{tpu_custom_call.1} parent=1 // pred_check
      _
    $region11: #{tpu_custom_call.1} parent=1 // pred_check_branch
      %35 = sbr.rel (0) target = $region13
    $region12: #{tpu_custom_call.1} parent=1 // pred_region
      %36 = dma.done [#allocation4], 128
    $region13: #{tpu_custom_call.1} parent=1 // pred_fallthru
      _
    // Predicated region
    $region14: #{tpu_custom_call.1} parent=1 // pred_check
      _
    $region15: #{tpu_custom_call.1} parent=1 // pred_check_branch
      %38 = sbr.rel (0) target = $region17
    $region16: #{tpu_custom_call.1} parent=1 // pred_region
      %39 = dma.done [#allocation7], 256
    $region17: #{tpu_custom_call.1} parent=1 // pred_fallthru
      _
    %p41 = scmp.eq.s32.totalorder 0, 0
    // Predicated region
    $region18: #{tpu_custom_call.1} parent=1 // pred_check
      %p42 = pneg %p41
    $region19: #{tpu_custom_call.1} parent=1 // pred_check_branch
      %44 = sbr.rel (%p42) target = $region21
    $region20: #{tpu_custom_call.1} parent=1 // pred_region
      %45 = vst [vmem:[#allocation2] sm:$0xff] 0.0
      %46 = vst [vmem:[#allocation2 + $0x8] sm:$0xff] 0.0
    $region21: #{tpu_custom_call.1} parent=1 // pred_fallthru
      _
    %v47 = vld [vmem:[#allocation2] sm:$0xff]
    %v48 = vld [vmem:[#allocation2 + $0x8] sm:$0xff]
    %v49 = vld [vmem:[#allocation3] sm:$0xf]
    %v50 = vld [vmem:[#allocation3 + $0x4] sm:$0xf]
    %v51 = vld [vmem:[#allocation6] sm:$0xf]
    %v52 = vld [vmem:[#allocation6 + $0x4] sm:$0xf]
    %v53 = vld [vmem:[#allocation6 + $0x8] sm:$0xf]
    %v54 = vld [vmem:[#allocation6 + $0xc] sm:$0xf]
    %v57 = vunpack.c.l.b16 %v49
    %v58 = vunpack.c.l.b16 %v50
    %v59 = vpack.c.b16 %v58, %v57
    %v64 = vunpack.c.l.b16 %v51
    %v65 = vunpack.c.l.b16 %v52
    %v66 = vunpack.c.l.b16 %v53
    %v67 = vunpack.c.l.b16 %v54
    %v68 = vpack.c.b16 %v65, %v64
    %v69 = vpack.c.b16 %v67, %v66
    %vm72 = vcmask 261120
    %v74 = vsel %vm72, %v59, 0
    %76 = vmatprep.subr.bf16.mxu0 0
    %77 = vmatpush1.bf16.msra.mxu0 %v68
    %78 = vmatprep.subr.bf16.mxu0 0
    %79 = vmatpush1.bf16.msra.mxu0 %v69
    %80 = vmatprep.subr.bf16.mxu0 0
    %81 = vmatpush1.bf16.msra.mxu0 0
    %82 = vmatprep.subr.bf16.mxu0 0
    %83 = vmatpush1.bf16.msra.mxu0 0
    %84 = vmatprep.subr.bf16.mxu0 0
    %85 = vmatpush1.bf16.msra.mxu0 0
    %86 = vmatprep.subr.bf16.mxu0 0
    %87 = vmatpush1.bf16.msra.mxu0 0
    %88 = vmatprep.subr.bf16.mxu0 0
    %89 = vmatpush1.bf16.msra.mxu0 0
    %90 = vmatprep.subr.bf16.mxu0 0
    %91 = vmatpush1.bf16.msra.mxu0 0
    %92 = vmatprep.subr.bf16.mxu0 0
    %93 = vmatpush1.bf16.msra.mxu0 0
    %94 = vmatprep.subr.bf16.mxu0 0
    %95 = vmatpush1.bf16.msra.mxu0 0
    %96 = vmatprep.subr.bf16.mxu0 0
    %97 = vmatpush1.bf16.msra.mxu0 0
    %98 = vmatprep.subr.bf16.mxu0 0
    %99 = vmatpush1.bf16.msra.mxu0 0
    %100 = vmatprep.subr.bf16.mxu0 0
    %101 = vmatpush1.bf16.msra.mxu0 0
    %102 = vmatprep.subr.bf16.mxu0 0
    %103 = vmatpush1.bf16.msra.mxu0 0
    %104 = vmatprep.subr.bf16.mxu0 0
    %105 = vmatpush1.bf16.msra.mxu0 0
    %106 = vmatprep.subr.bf16.mxu0 0
    %107 = vmatpush1.bf16.msra.mxu0 0
    %108 = vmatprep.mubr.bf16.mxu0 0
    %109 = vmatmul.mubr.bf16.gmra.mrb[0].mxu0 %v74
    %v110 = vpop.f32.mrb[0].mxu0
    %v111 = vadd.f32 0.0, %v110
    %v112 = vpop.f32.mrb[0].mxu0
    %v113 = vpop.f32.mrb[0].mxu0
    %v114 = vadd.f32 0.0, %v113
    %v115 = vpop.f32.mrb[0].mxu0
    %116 = vdwg.mxu0
    %v117 = vadd.f32 %v47, %v111
    %v118 = vadd.f32 %v48, %v114
    %119 = vst [vmem:[#allocation2] sm:$0xff] %v117
    %120 = vst [vmem:[#allocation2 + $0x8] sm:$0xff] %v118
    // Predicated region
    $region22: #{tpu_custom_call.1} parent=1 // pred_check
      %p121 = pneg %p41
    $region23: #{tpu_custom_call.1} parent=1 // pred_check_branch
      %123 = sbr.rel (%p121) target = $region25
    $region24: #{tpu_custom_call.1} parent=1 // pred_region
      %v124 = vld [vmem:[#allocation2] sm:$0xff]
      %v125 = vld [vmem:[#allocation2 + $0x8] sm:$0xff]
      %126 = vst [vmem:[#allocation8] sm:$0xff] %v124
      %127 = vst [vmem:[#allocation8 + $0x8] sm:$0xff] %v125
    $region25: #{tpu_custom_call.1} parent=1 // pred_fallthru
      _
    // Predicated region
    $region26: #{tpu_custom_call.1} parent=1 // pred_check
      _
    $region27: #{tpu_custom_call.1} parent=1 // pred_check_branch
      %129 = sbr.rel (0) target = $region29
    $region28: #{tpu_custom_call.1} parent=1 // pred_region
      %s131 = ssub.s32 256, 256
      %132 = vsyncadd [#allocation5], %s131
      %s133 = sshll.u32 [#allocation8], 4
      %s134 = int_to_ptr.vmem [resolvable:$true] %s133
      %139 = dma.vmem_to_hbm [thread:$0]  %s134, 256, %s2, [#allocation5], 128, 128, 8
    $region29: #{tpu_custom_call.1} parent=1 // pred_fallthru
      _
    // Predicated region
    $region30: #{tpu_custom_call.1} parent=1 // pred_check
      _
    $region31: #{tpu_custom_call.1} parent=1 // pred_check_branch
      %141 = sbr.rel (0) target = $region33
    $region32: #{tpu_custom_call.1} parent=1 // pred_region
      %142 = dma.done [#allocation5], 256
    $region33: #{tpu_custom_call.1} parent=1 // pred_fallthru
      _
    %143 = vsyncpa [#allocation4], 1
    %144 = vsyncpa [#allocation7], 1
    %145 = vsyncpa [#allocation5], 1

</llo_original>
